<compile_context>
chip_gen: v6e
topology: v6e:2x2x1
jax: 0.10.0
libtpu: 0.0.40
codegen_flags: <defaults>
</compile_context>

<pallas_src>
import jax
import jax.numpy as jnp
import numpy as np
from jax import lax
from jax.experimental import pallas as pl
from jax.experimental.pallas import tpu as pltpu

# ----------------------------- problem sizes -------------------------------
T, C, H, W = 8, 4, 16, 16        # x: (T frames, C channels, H, W)
C_OUT = C                        # restored frame keeps C channels
BATCH_SIZE = 2
P = H * W                        # 256 pixels -> lane-dense last dim (2 x 128 lanes)
K = C * T                        # 32 fused channel-time features per pixel


# ----------------------------- fused Pallas kernel --------------------------
def _make_generator_kernel(batch_size):
    def kernel(x_ref, w_ref, p_ref, out_ref, y_ref):
        # x_ref  : (T*C, P)            fused channel-time features, pixels on lanes
        # w_ref  : (C_OUT, T*C)        restorer weight (transposed -> lane-dense out)
        # p_ref  : (C_OUT, 3)          per-channel [bias, gain, offset]
        # out_ref: (batch_size*C_OUT, P)  simulator output (flat)
        # y_ref  : (C_OUT, P)          restored frame (flat)
        params = p_ref[...]
        bias = params[:, 0:1]
        gain = params[:, 1:2]
        offset = params[:, 2:3]

        # --- restorer: per-pixel matmul + bias + ReLU (MXU, (4,32)@(32,256)) ---
        y = jnp.dot(w_ref[...], x_ref[...], preferred_element_type=jnp.float32)
        y = jnp.maximum(y + bias, 0.0)
        y_ref[...] = y

        # --- simulator: separable 3x3 circular mean blur + per-channel affine ---
        # Flat (C_OUT, H*W) layout: H-rolls are +-W on the 256-lane axis; W-rolls
        # are +-1 with a wrap fix at the w==0 / w==W-1 row boundaries.
        w_idx = lax.broadcasted_iota(jnp.int32, (C_OUT, P), 1) % W
        left = jnp.where(w_idx == 0,
                         pltpu.roll(y, P - (W - 1), 1),   # wrap to (h, W-1)
                         pltpu.roll(y, 1, 1))             # (h, w-1)
        right = jnp.where(w_idx == W - 1,
                          pltpu.roll(y, W - 1, 1),        # wrap to (h, 0)
                          pltpu.roll(y, P - 1, 1))        # (h, w+1)
        hsum = y + left + right
        vsum = hsum + pltpu.roll(hsum, W, 1) + pltpu.roll(hsum, P - W, 1)
        sim = vsum * (1.0 / 9.0) * gain + offset

        # torch.cat([y]*batch_size, dim=0): gain/offset are channel-only, so the
        # simulator result is batch-invariant -> compute once, replicate rows.
        for b in range(batch_size):
            out_ref[b * C_OUT:(b + 1) * C_OUT, :] = sim

    return kernel


# ----------------------------- wrapper --------------------------------------
def generator_forward(x, w_r, b_r, gain, offset, batch_size):
    # x: (T, C, H, W); w_r: (K, C_OUT) with k = c*T + t; b_r: (1, C_OUT)
    # Contiguous reshape of x (no relayout): row index k' = t*C + c.
    x_flat = x.reshape(T * C, P)
    # Permute the tiny weight once so its K axis matches k' = t*C + c and the
    # matmul output is (C_OUT, P) lane-dense.
    w2 = w_r.reshape(C, T, C_OUT).transpose(2, 1, 0).reshape(C_OUT, T * C)
    params = jnp.stack([b_r.reshape(C_OUT), gain, offset], axis=1).astype(jnp.float32)

    out_flat, y_flat = pl.pallas_call(
        _make_generator_kernel(batch_size),
        out_shape=(
            jax.ShapeDtypeStruct((batch_size * C_OUT, P), jnp.float32),
            jax.ShapeDtypeStruct((C_OUT, P), jnp.float32),
        ),
        grid=(1,),
        in_specs=[
            pl.BlockSpec((T * C, P), lambda i: (0, 0)),
            pl.BlockSpec((C_OUT, T * C), lambda i: (0, 0)),
            pl.BlockSpec((C_OUT, 3), lambda i: (0, 0)),
        ],
        out_specs=(
            pl.BlockSpec((batch_size * C_OUT, P), lambda i: (0, 0)),
            pl.BlockSpec((C_OUT, P), lambda i: (0, 0)),
        ),
    )(x_flat, w2, params)

    output = out_flat.reshape(batch_size, C_OUT, H, W)   # contiguous reshape (free)
    y = y_flat.reshape(1, C_OUT, H, W)                   # contiguous reshape (free)
    return output, y


# ----------------------------- pure-JAX reference ---------------------------
def _reference(x, w_r, b_r, gain, offset, batch_size):
    xp = jnp.transpose(x, (1, 0, 2, 3))[None]             # (1, C, T, H, W)
    xm = xp.reshape(K, P).T                                # (P, K), k = c*T + t
    y = jnp.maximum(xm @ w_r + b_r, 0.0)                   # (P, C_OUT)
    y4 = y.T.reshape(1, C_OUT, H, W)
    yb = jnp.concatenate([y4] * batch_size, axis=0)        # (B, C_OUT, H, W)
    blur = jnp.zeros_like(yb)
    for di in (-1, 0, 1):
        for dj in (-1, 0, 1):
            blur = blur + jnp.roll(jnp.roll(yb, di, axis=-2), dj, axis=-1)
    blur = blur / 9.0
    out = blur * gain[None, :, None, None] + offset[None, :, None, None]
    return out, y4


# ----------------------------- main ------------------------------------------
if __name__ == "__main__":
    key = jax.random.PRNGKey(0)
    kx, kw, kb = jax.random.split(key, 3)

    x = jax.random.normal(kx, (T, C, H, W), dtype=jnp.float32)

    # Restorer parameters (deterministic synthetic init); k ordered as c*T + t.
    w_r = jax.random.normal(kw, (K, C_OUT), dtype=jnp.float32) * 0.1
    b_r = jax.random.normal(kb, (1, C_OUT), dtype=jnp.float32) * 0.01

    # Fixed Simulator turbulence parameters (requires_grad=False in torch).
    # TODO(synk): real Simulator(turb_params, data_path=...) internals are not
    # provided; a fixed per-channel circular blur + affine stand-in is used.
    turb_params = {"D": 0.1, "r0": 0.05}
    gain = 1.0 + turb_params["D"] * jnp.arange(C_OUT, dtype=jnp.float32)
    offset = turb_params["r0"] * (jnp.arange(C_OUT, dtype=jnp.float32) - 1.5)

    output, y = generator_forward(x, w_r, b_r, gain, offset, BATCH_SIZE)
    jax.block_until_ready((output, y))

    ref_out, ref_y = _reference(x, w_r, b_r, gain, offset, BATCH_SIZE)
    assert output.shape == (BATCH_SIZE, C_OUT, H, W)
    assert y.shape == (1, C_OUT, H, W)
    np.testing.assert_allclose(np.asarray(y), np.asarray(ref_y), atol=1e-5, rtol=1e-5)
    np.testing.assert_allclose(np.asarray(output), np.asarray(ref_out), atol=1e-5, rtol=1e-5)

    print("KERNEL_OK")
</pallas_src>

<mosaic_0001>
module attributes {stable_mosaic.version = 11 : i64} {
  func.func @kernel(%arg0: i32, %arg1: memref<32x256xf32, #tpu.memory_space<vmem>>, %arg2: memref<4x32xf32, #tpu.memory_space<vmem>>, %arg3: memref<4x3xf32, #tpu.memory_space<vmem>>, %arg4: memref<8x256xf32, #tpu.memory_space<vmem>>, %arg5: memref<4x256xf32, #tpu.memory_space<vmem>>) attributes {dimension_semantics = [#tpu.dimension_semantics<arbitrary>], iteration_bounds = array<i64: 1>, scalar_prefetch = 0 : i64, scratch_operands = 0 : i64, tpu.core_type = #tpu.core_type<tc>, window_params = [{pipeline_mode = #tpu.pipeline_mode<synchronous>, transform_indices = @transform_0, window_bounds = array<i64: 32, 256>}, {pipeline_mode = #tpu.pipeline_mode<synchronous>, transform_indices = @transform_1, window_bounds = array<i64: 4, 32>}, {pipeline_mode = #tpu.pipeline_mode<synchronous>, transform_indices = @transform_2, window_bounds = array<i64: 4, 3>}, {pipeline_mode = #tpu.pipeline_mode<synchronous>, transform_indices = @transform_3, window_bounds = array<i64: 8, 256>}, {pipeline_mode = #tpu.pipeline_mode<synchronous>, transform_indices = @transform_4, window_bounds = array<i64: 4, 256>}]} {
    %c0 = arith.constant 0 : index
    %c0_0 = arith.constant 0 : index
    %0 = vector.load %arg3[%c0, %c0_0] : memref<4x3xf32, #tpu.memory_space<vmem>>, vector<4x3xf32>
    %1 = vector.extract_strided_slice %0 {offsets = [0, 0], sizes = [4, 1], strides = [1, 1]} : vector<4x3xf32> to vector<4x1xf32>
    %2 = vector.extract_strided_slice %0 {offsets = [0, 1], sizes = [4, 1], strides = [1, 1]} : vector<4x3xf32> to vector<4x1xf32>
    %3 = vector.extract_strided_slice %0 {offsets = [0, 2], sizes = [4, 1], strides = [1, 1]} : vector<4x3xf32> to vector<4x1xf32>
    %c0_1 = arith.constant 0 : index
    %c0_2 = arith.constant 0 : index
    %4 = vector.load %arg2[%c0_1, %c0_2] : memref<4x32xf32, #tpu.memory_space<vmem>>, vector<4x32xf32>
    %c0_3 = arith.constant 0 : index
    %c0_4 = arith.constant 0 : index
    %5 = vector.load %arg1[%c0_3, %c0_4] : memref<32x256xf32, #tpu.memory_space<vmem>>, vector<32x256xf32>
    %cst = arith.constant dense<0.000000e+00> : vector<4x256xf32>
    %6 = tpu.matmul %4, %5, %cst {dimension_numbers = #tpu.dot_dimension_numbers<[1], [0], [0], [1], [0, 0, 1, 1], [], []>} : vector<4x32xf32>, vector<32x256xf32>, vector<4x256xf32> -> vector<4x256xf32>
    %7 = vector.broadcast %1 : vector<4x1xf32> to vector<4x256xf32>
    %8 = arith.addf %6, %7 : vector<4x256xf32>
    %cst_5 = arith.constant 0.000000e+00 : f32
    %9 = vector.broadcast %cst_5 : f32 to vector<4x256xf32>
    %10 = arith.maximumf %8, %9 : vector<4x256xf32>
    %c0_6 = arith.constant 0 : index
    %c0_7 = arith.constant 0 : index
    %11 = vector.load %arg5[%c0_6, %c0_7] : memref<4x256xf32, #tpu.memory_space<vmem>>, vector<4x256xf32>
    tpu.vector_store %arg5[%c0_6, %c0_7], %10 {strides = array<i32>} : memref<4x256xf32, #tpu.memory_space<vmem>>, vector<4x256xf32>,
    %12 = tpu.iota {dimensions = array<i32: 1>} : vector<4x256xi32>
    %c16_i32 = arith.constant 16 : i32
    %c0_i32 = arith.constant 0 : i32
    %13 = arith.cmpi eq, %c16_i32, %c0_i32 : i32
    %c1_i32 = arith.constant 1 : i32
    %14 = arith.select %13, %c1_i32, %c16_i32 : i32
    %15 = vector.broadcast %14 : i32 to vector<4x256xi32>
    %16 = arith.remsi %12, %15 : vector<4x256xi32>
    %c0_i32_8 = arith.constant 0 : i32
    %17 = vector.broadcast %c0_i32_8 : i32 to vector<4x256xi32>
    %18 = arith.cmpi ne, %16, %17 : vector<4x256xi32>
    %c0_i32_9 = arith.constant 0 : i32
    %19 = vector.broadcast %c0_i32_9 : i32 to vector<4x256xi32>
    %20 = arith.cmpi slt, %16, %19 : vector<4x256xi32>
    %c0_i32_10 = arith.constant 0 : i32
    %21 = arith.cmpi slt, %14, %c0_i32_10 : i32
    %22 = vector.broadcast %21 : i1 to vector<4x256xi1>
    %23 = vector.broadcast %22 : vector<4x256xi1> to vector<4x256xi1>
    %24 = arith.xori %20, %23 : vector<4x256xi1>
    %25 = arith.andi %24, %18 : vector<4x256xi1>
    %26 = vector.broadcast %14 : i32 to vector<4x256xi32>
    %27 = arith.addi %16, %26 : vector<4x256xi32>
    %28 = arith.select %25, %27, %16 : vector<4x256xi1>, vector<4x256xi32>
    %c0_i32_11 = arith.constant 0 : i32
    %29 = vector.broadcast %c0_i32_11 : i32 to vector<4x256xi32>
    %30 = arith.cmpi eq, %28, %29 : vector<4x256xi32>
    %c241_i32 = arith.constant 241 : i32
    %31 = tpu.dynamic_rotate %10 by %c241_i32 dim 1 : vector<4x256xf32>, i32 -> vector<4x256xf32>
    %c1_i32_12 = arith.constant 1 : i32
    %32 = tpu.dynamic_rotate %10 by %c1_i32_12 dim 1 : vector<4x256xf32>, i32 -> vector<4x256xf32>
    %33 = arith.select %30, %31, %32 : vector<4x256xi1>, vector<4x256xf32>
    %c15_i32 = arith.constant 15 : i32
    %34 = vector.broadcast %c15_i32 : i32 to vector<4x256xi32>
    %35 = arith.cmpi eq, %28, %34 : vector<4x256xi32>
    %c15_i32_13 = arith.constant 15 : i32
    %36 = tpu.dynamic_rotate %10 by %c15_i32_13 dim 1 : vector<4x256xf32>, i32 -> vector<4x256xf32>
    %c255_i32 = arith.constant 255 : i32
    %37 = tpu.dynamic_rotate %10 by %c255_i32 dim 1 : vector<4x256xf32>, i32 -> vector<4x256xf32>
    %38 = arith.select %35, %36, %37 : vector<4x256xi1>, vector<4x256xf32>
    %39 = arith.addf %10, %33 : vector<4x256xf32>
    %40 = arith.addf %39, %38 : vector<4x256xf32>
    %c16_i32_14 = arith.constant 16 : i32
    %41 = tpu.dynamic_rotate %40 by %c16_i32_14 dim 1 : vector<4x256xf32>, i32 -> vector<4x256xf32>
    %42 = arith.addf %40, %41 : vector<4x256xf32>
    %c240_i32 = arith.constant 240 : i32
    %43 = tpu.dynamic_rotate %40 by %c240_i32 dim 1 : vector<4x256xf32>, i32 -> vector<4x256xf32>
    %44 = arith.addf %42, %43 : vector<4x256xf32>
    %cst_15 = arith.constant 0.111111112 : f32
    %45 = vector.broadcast %cst_15 : f32 to vector<4x256xf32>
    %46 = arith.mulf %44, %45 : vector<4x256xf32>
    %47 = vector.broadcast %2 : vector<4x1xf32> to vector<4x256xf32>
    %48 = arith.mulf %46, %47 : vector<4x256xf32>
    %49 = vector.broadcast %3 : vector<4x1xf32> to vector<4x256xf32>
    %50 = arith.addf %48, %49 : vector<4x256xf32>
    %c0_16 = arith.constant 0 : index
    %c0_17 = arith.constant 0 : index
    %51 = vector.load %arg4[%c0_16, %c0_17] : memref<8x256xf32, #tpu.memory_space<vmem>>, vector<4x256xf32>
    tpu.vector_store %arg4[%c0_16, %c0_17], %50 {strides = array<i32>} : memref<8x256xf32, #tpu.memory_space<vmem>>, vector<4x256xf32>,
    %c4 = arith.constant 4 : index
    %c0_18 = arith.constant 0 : index
    %52 = vector.load %arg4[%c4, %c0_18] : memref<8x256xf32, #tpu.memory_space<vmem>>, vector<4x256xf32>
    tpu.vector_store %arg4[%c4, %c0_18], %50 {strides = array<i32>} : memref<8x256xf32, #tpu.memory_space<vmem>>, vector<4x256xf32>,
    return
  }
  func.func @transform_0(%arg0: i32) -> (i32, i32) {
    %c0_i32 = arith.constant 0 : i32
    %c0_i32_0 = arith.constant 0 : i32
    %c0_i32_1 = arith.constant 0 : i32
    return %c0_i32, %c0_i32_0 : i32, i32
  }
  func.func @transform_1(%arg0: i32) -> (i32, i32) {
    %c0_i32 = arith.constant 0 : i32
    %c0_i32_0 = arith.constant 0 : i32
    %c0_i32_1 = arith.constant 0 : i32
    return %c0_i32, %c0_i32_0 : i32, i32
  }
  func.func @transform_2(%arg0: i32) -> (i32, i32) {
    %c0_i32 = arith.constant 0 : i32
    %c0_i32_0 = arith.constant 0 : i32
    %c0_i32_1 = arith.constant 0 : i32
    return %c0_i32, %c0_i32_0 : i32, i32
  }
  func.func @transform_3(%arg0: i32) -> (i32, i32) {
    %c0_i32 = arith.constant 0 : i32
    %c0_i32_0 = arith.constant 0 : i32
    %c0_i32_1 = arith.constant 0 : i32
    return %c0_i32, %c0_i32_0 : i32, i32
  }
  func.func @transform_4(%arg0: i32) -> (i32, i32) {
    %c0_i32 = arith.constant 0 : i32
    %c0_i32_0 = arith.constant 0 : i32
    %c0_i32_1 = arith.constant 0 : i32
    return %c0_i32, %c0_i32_0 : i32, i32
  }
}

</mosaic_0001>

<llo_original>
// kernel: tpu_custom_call.1
$region0: #{tpu_custom_call.1}
  #allocation0 [shape = 'u32[]', space=smem, size = 0x4, offset = 0x4, fixed_abs, tag = 'smem constant byte address 0x4 - core index']
  #allocation1 [shape = 'u32[144,128]{1,0:T(1,128)}', space=vmem, size = 0x12000, scoped, tag = 'internal scratch']
  %s0 = inlined_call_operand.hbm [shape: f32[32,256], index: 0, kind: input, shape index: {}]
  %s1 = inlined_call_operand.hbm [shape: f32[4,32], index: 1, kind: input, shape index: {}]
  %s2 = inlined_call_operand.hbm [shape: f32[4,3], index: 2, kind: input, shape index: {}]
  %s3 = inlined_call_operand.hbm [shape: f32[8,256], index: 3, kind: output, shape index: {0}]
  %s4 = inlined_call_operand.hbm [shape: f32[4,256], index: 4, kind: output, shape index: {1}]
  %5 = xla_tuple %s3, %s4
  %s6 = sld [smem:[#allocation0]]
  $region42: #{tpu_custom_call.1} parent=0
    _
  %s8 = ssub.s32 1, %s6
  %s9 = scalar_select 0, %s8, %s6
  $region1: #{tpu_custom_call.1} parent=0
    #allocation2 [shape = 'u8[32768]{0}', space=vmem, size = 0x8000, scoped, tag = 'input window, operand 0, single buffered']
    #allocation3 [shape = 's32[1]{0}', space=sflag, size = 0x4, scoped, tag = 'scoped memory for tpu_custom_call.1']
    #allocation4 [shape = 's32[1]{0}', space=sflag, size = 0x4, scoped, tag = 'scoped memory for tpu_custom_call.1']
    #allocation5 [shape = 'u8[2048]{0}', space=vmem, size = 0x800, scoped, tag = 'input window, operand 1, single buffered']
    #allocation6 [shape = 's32[1]{0}', space=sflag, size = 0x4, scoped, tag = 'scoped memory for tpu_custom_call.1']
    #allocation7 [shape = 'u8[2048]{0}', space=vmem, size = 0x800, scoped, tag = 'input window, operand 2, single buffered']
    #allocation8 [shape = 'u8[8192]{0}', space=vmem, size = 0x2000, scoped, tag = 'output window, operand 0, single buffered']
    #allocation9 [shape = 'u8[4096]{0}', space=vmem, size = 0x1000, scoped, tag = 'output window, operand 1, single buffered']
    #allocation10 [shape = 's32[1]{0}', space=sflag, size = 0x4, scoped, tag = 'scoped memory for tpu_custom_call.1']
    %10 = vsyncpa [#allocation3], 0
    %11 = vsyncpa [#allocation6], 0
    %12 = vsyncpa [#allocation4], 0
    %13 = vsyncpa [#allocation10], 0
    // Predicated region
    $region2: #{tpu_custom_call.1} parent=1 // pred_check
      _
    $region3: #{tpu_custom_call.1} parent=1 // pred_check_branch
      %15 = sbr.rel (0) target = $region5
    $region4: #{tpu_custom_call.1} parent=1 // pred_region
      %s17 = ssub.s32 1024, 1024
      %18 = vsyncadd [#allocation3], %s17
      %s19 = sshll.u32 [#allocation2], 4
      %s20 = int_to_ptr.vmem [resolvable:$true] %s19
      %25 = dma.hbm_to_vmem [thread:$0]  %s0, 1024, %s20, [#allocation3], 256, 256, 16
    $region5: #{tpu_custom_call.1} parent=1 // pred_fallthru
      _
    // Predicated region
    $region6: #{tpu_custom_call.1} parent=1 // pred_check
      _
    $region7: #{tpu_custom_call.1} parent=1 // pred_check_branch
      %27 = sbr.rel (0) target = $region9
    $region8: #{tpu_custom_call.1} parent=1 // pred_region
      %s29 = ssub.s32 64, 64
      %30 = vsyncadd [#allocation6], %s29
      %s32 = sshll.u32 [#allocation5], 4
      %s33 = int_to_ptr.vmem [resolvable:$true] %s32
      %35 = dma.hbm_to_vmem [thread:$0]  %s1, 64, %s33, [#allocation6]
    $region9: #{tpu_custom_call.1} parent=1 // pred_fallthru
      _
    // Predicated region
    $region10: #{tpu_custom_call.1} parent=1 // pred_check
      _
    $region11: #{tpu_custom_call.1} parent=1 // pred_check_branch
      %37 = sbr.rel (0) target = $region13
    $region12: #{tpu_custom_call.1} parent=1 // pred_region
      %s39 = ssub.s32 64, 64
      %40 = vsyncadd [#allocation6], %s39
      %s42 = sshll.u32 [#allocation7], 4
      %s43 = int_to_ptr.vmem [resolvable:$true] %s42
      %45 = dma.hbm_to_vmem [thread:$0]  %s2, 64, %s43, [#allocation6]
    $region13: #{tpu_custom_call.1} parent=1 // pred_fallthru
      _
    // Predicated region
    $region14: #{tpu_custom_call.1} parent=1 // pred_check
      _
    $region15: #{tpu_custom_call.1} parent=1 // pred_check_branch
      %47 = sbr.rel (0) target = $region17
    $region16: #{tpu_custom_call.1} parent=1 // pred_region
      %48 = dma.done [#allocation3], 1024
    $region17: #{tpu_custom_call.1} parent=1 // pred_fallthru
      _
    // Predicated region
    $region18: #{tpu_custom_call.1} parent=1 // pred_check
      _
    $region19: #{tpu_custom_call.1} parent=1 // pred_check_branch
      %50 = sbr.rel (0) target = $region21
    $region20: #{tpu_custom_call.1} parent=1 // pred_region
      %51 = dma.done [#allocation6], 64
    $region21: #{tpu_custom_call.1} parent=1 // pred_fallthru
      _
    // Predicated region
    $region22: #{tpu_custom_call.1} parent=1 // pred_check
      _
    $region23: #{tpu_custom_call.1} parent=1 // pred_check_branch
      %53 = sbr.rel (0) target = $region25
    $region24: #{tpu_custom_call.1} parent=1 // pred_region
      %54 = dma.done [#allocation6], 64
    $region25: #{tpu_custom_call.1} parent=1 // pred_fallthru
      _
    %v55 = vld [vmem:[#allocation7] sm:$0xf]
    %v56 = vld [vmem:[#allocation5] sm:$0xf]
    %v57 = vld [vmem:[#allocation2] sm:$0xff]
    %v58 = vld [vmem:[#allocation2 + $0x8] sm:$0xff]
    %v59 = vld [vmem:[#allocation2 + $0x10] sm:$0xff]
    %v60 = vld [vmem:[#allocation2 + $0x18] sm:$0xff]
    %v61 = vld [vmem:[#allocation2 + $0x20] sm:$0xff]
    %v62 = vld [vmem:[#allocation2 + $0x28] sm:$0xff]
    %v63 = vld [vmem:[#allocation2 + $0x30] sm:$0xff]
    %v64 = vld [vmem:[#allocation2 + $0x38] sm:$0xff]
    %66 = vset.pattern.permute.xlu0 0
    %67 = vperm.xlu0 %66, %v55
    %v68 = vpop.permute.xlu0 %67
    %vm70 = vcmask 261120
    %v72 = vsel %vm70, %v56, 0
    %74 = vmatprep.subr.mxu0 0.0
    %75 = vmatpush1.msra.mxu0 0.0
    %76 = vmatprep.subr.mxu0 0.0
    %77 = vmatpush1.msra.mxu0 0.0
    %78 = vmatprep.subr.mxu0 0.0
    %79 = vmatpush1.msra.mxu0 0.0
    %80 = vmatprep.subr.mxu0 0.0
    %81 = vmatpush1.msra.mxu0 0.0
    %82 = vmatprep.subr.mxu0 0.0
    %83 = vmatpush1.msra.mxu0 0.0
    %84 = vmatprep.subr.mxu0 0.0
    %85 = vmatpush1.msra.mxu0 0.0
    %86 = vmatprep.subr.mxu0 0.0
    %87 = vmatpush1.msra.mxu0 0.0
    %88 = vmatprep.subr.mxu0 0.0
    %89 = vmatpush1.msra.mxu0 0.0
    %90 = vmatprep.subr.mxu0 0.0
    %91 = vmatpush1.msra.mxu0 0.0
    %92 = vmatprep.subr.mxu0 0.0
    %93 = vmatpush1.msra.mxu0 0.0
    %94 = vmatprep.subr.mxu0 0.0
    %95 = vmatpush1.msra.mxu0 0.0
    %96 = vmatprep.subr.mxu0 0.0
    %97 = vmatpush1.msra.mxu0 0.0
    %98 = vmatprep.subr.mxu0 %v64
    %99 = vmatpush1.msra.mxu0 %v63
    %100 = vmatprep.subr.mxu0 %v62
    %101 = vmatpush1.msra.mxu0 %v61
    %102 = vmatprep.subr.mxu0 %v60
    %103 = vmatpush1.msra.mxu0 %v59
    %104 = vmatprep.subr.mxu0 %v58
    %105 = vmatpush1.msra.mxu0 %v57
    %106 = vmatprep.subr.mxu0 0.0
    %107 = vmatpush2.msra.mxu0 0.0
    %108 = vmatprep.subr.mxu0 0.0
    %109 = vmatpush2.msra.mxu0 0.0
    %110 = vmatprep.subr.mxu0 0.0
    %111 = vmatpush2.msra.mxu0 0.0
    %112 = vmatprep.subr.mxu0 0.0
    %113 = vmatpush2.msra.mxu0 0.0
    %114 = vmatprep.subr.mxu0 0.0
    %115 = vmatpush2.msra.mxu0 0.0
    %116 = vmatprep.subr.mxu0 0.0
    %117 = vmatpush2.msra.mxu0 0.0
    %118 = vmatprep.subr.mxu0 0.0
    %119 = vmatpush2.msra.mxu0 0.0
    %120 = vmatprep.subr.mxu0 0.0
    %121 = vmatpush2.msra.mxu0 0.0
    %122 = vmatprep.subr.mxu0 0.0
    %123 = vmatpush2.msra.mxu0 0.0
    %124 = vmatprep.subr.mxu0 0.0
    %125 = vmatpush2.msra.mxu0 0.0
    %126 = vmatprep.subr.mxu0 0.0
    %127 = vmatpush2.msra.mxu0 0.0
    %128 = vmatprep.subr.mxu0 0.0
    %129 = vmatpush2.msra.mxu0 0.0
    %130 = vmatprep.subr.mxu0 0.0
    %131 = vmatpush2.msra.mxu0 0.0
    %132 = vmatprep.subr.mxu0 0.0
    %133 = vmatpush2.msra.mxu0 0.0
    %134 = vmatprep.subr.mxu0 0.0
    %135 = vmatpush2.msra.mxu0 0.0
    %136 = vmatprep.subr.mxu0 0.0
    %137 = vmatpush2.msra.mxu0 0.0
    %138 = vmatprep.mubr.f32.mxu0 0.0
    %139 = vmatmul.mubr.f32.gmra.mxu0 %v72
    %v140 = vpop.f32.mrf.mxu0
    %v141 = vadd.f32 %v68, %v140
    %v142 = vpop.f32.mrf.mxu0
    %v143 = vadd.f32 %v68, %v142
    %144 = vdwg.mxu0
    %v145 = vmax.f32 %v141, 0.0
    %v146 = vmax.f32 %v143, 0.0
    %v149 = vcombine.low %v145, %v146
    %151 = vst [vmem:[#allocation9] sm:$0xff] %v149
    %v152 = vlaneseq
    %v153 = vand.u32 %v152, 127
    %v154 = vadd.s32 %v153, 128
    %vm155 = vcmp.lt.s32.totalorder %v153, 0
    %v156 = vsub.s32 0, %v153
    %v157 = vsel %vm155, %v156, %v153
    %v158 = vshrl.u32 %v157, 4
    %v159 = vand.u32 %v157, 15
    %v160 = vsub.s32 0, %v159
    %v161 = vsel %vm155, %v160, %v159
    %vm162 = vcmp.lt.s32.totalorder %v154, 0
    %v163 = vsub.s32 0, %v154
    %v164 = vsel %vm162, %v163, %v154
    %v165 = vshrl.u32 %v164, 4
    %v166 = vand.u32 %v164, 15
    %v167 = vsub.s32 0, %v166
    %v168 = vsel %vm162, %v167, %v166
    %vm169 = vcmp.ne.s32.totalorder %v161, 0
    %vm170 = vcmp.ne.s32.totalorder %v168, 0
    %vm171 = vcmp.lt.s32.totalorder %v161, 0
    %vm172 = vcmp.lt.s32.totalorder %v168, 0
    %vm173 = vmand %vm171, %vm169
    %vm174 = vmand %vm172, %vm170
    %v175 = vadd.s32 %v161, 16
    %v176 = vadd.s32 %v168, 16
    %v177 = vsel %vm173, %v175, %v161
    %v178 = vsel %vm174, %v176, %v168
    %vm179 = vcmp.eq.s32.totalorder %v177, 0
    %vm180 = vcmp.eq.s32.totalorder %v178, 0
    %181 = vrot.lane.b32.xlu0 %v145, 113
    %v182 = vpop.permute.xlu0 %181
    %183 = vrot.lane.b32.xlu0 %v146, 113
    %v184 = vpop.permute.xlu0 %183
    %vm185 = vcmp.lt.s32.totalorder %v153, 113
    %v186 = vsel %vm185, %v182, %v184
    %v187 = vsel %vm185, %v184, %v182
    %188 = vrot.lane.b32.xlu0 %v145, 1
    %v189 = vpop.permute.xlu0 %188
    %190 = vrot.lane.b32.xlu0 %v146, 1
    %v191 = vpop.permute.xlu0 %190
    %vm192 = vcmp.lt.s32.totalorder %v153, 1
    %v193 = vsel %vm192, %v189, %v191
    %v194 = vsel %vm192, %v191, %v189
    %v195 = vsel %vm179, %v186, %v194
    %v196 = vsel %vm180, %v187, %v193
    %vm197 = vcmp.eq.s32.totalorder %v177, 15
    %vm198 = vcmp.eq.s32.totalorder %v178, 15
    %199 = vrot.lane.b32.xlu0 %v145, 15
    %v200 = vpop.permute.xlu0 %199
    %201 = vrot.lane.b32.xlu0 %v146, 15
    %v202 = vpop.permute.xlu0 %201
    %vm203 = vcmp.lt.s32.totalorder %v153, 15
    %v204 = vsel %vm203, %v200, %v202
    %v205 = vsel %vm203, %v202, %v200
    %206 = vrot.lane.b32.xlu0 %v145, 127
    %v207 = vpop.permute.xlu0 %206
    %208 = vrot.lane.b32.xlu0 %v146, 127
    %v209 = vpop.permute.xlu0 %208
    %vm210 = vcmp.lt.s32.totalorder %v153, 127
    %v211 = vsel %vm210, %v207, %v209
    %v212 = vsel %vm210, %v209, %v207
    %v213 = vsel %vm197, %v205, %v211
    %v214 = vsel %vm198, %v204, %v212
    %v215 = vadd.f32 %v145, %v195
    %v216 = vadd.f32 %v146, %v196
    %v217 = vadd.f32 %v215, %v213
    %v218 = vadd.f32 %v216, %v214
    %219 = vrot.lane.b32.xlu0 %v217, 16
    %v220 = vpop.permute.xlu0 %219
    %221 = vrot.lane.b32.xlu0 %v218, 16
    %v222 = vpop.permute.xlu0 %221
    %vm223 = vcmp.lt.s32.totalorder %v153, 16
    %v224 = vsel %vm223, %v220, %v222
    %v225 = vsel %vm223, %v222, %v220
    %v226 = vadd.f32 %v217, %v225
    %v227 = vadd.f32 %v218, %v224
    %228 = vrot.lane.b32.xlu0 %v217, 112
    %v229 = vpop.permute.xlu0 %228
    %230 = vrot.lane.b32.xlu0 %v218, 112
    %v231 = vpop.permute.xlu0 %230
    %vm232 = vcmp.lt.s32.totalorder %v153, 112
    %v233 = vsel %vm232, %v229, %v231
    %v234 = vsel %vm232, %v231, %v229
    %v235 = vadd.f32 %v226, %v233
    %v236 = vadd.f32 %v227, %v234
    %v237 = vmul.f32 %v235, 0.11111111
    %v238 = vmul.f32 %v236, 0.11111111
    %239 = vset.pattern.permute.xlu0 1
    %240 = vperm.xlu0 %239, %v55
    %v241 = vpop.permute.xlu0 %240
    %v243 = vmul.f32 %v237, %v241
    %v244 = vmul.f32 %v238, %v241
    %245 = vset.pattern.permute.xlu0 2
    %246 = vperm.xlu0 %245, %v55
    %v247 = vpop.permute.xlu0 %246
    %v249 = vadd.f32 %v243, %v247
    %v250 = vadd.f32 %v244, %v247
    %251 = vst [vmem:[#allocation8] sm:$0xf] %v249
    %252 = vst [vmem:[#allocation8 + $0x8] sm:$0xf] %v250
    %v255 = vrot.slane %v249, 4
    %v256 = vrot.slane %v250, 4
    %259 = vst [vmem:[#allocation8] sm:$0xf0] %v255
    %260 = vst [vmem:[#allocation8 + $0x8] sm:$0xf0] %v256
    // Predicated region
    $region26: #{tpu_custom_call.1} parent=1 // pred_check
      _
    $region27: #{tpu_custom_call.1} parent=1 // pred_check_branch
      %262 = sbr.rel (0) target = $region29
    $region28: #{tpu_custom_call.1} parent=1 // pred_region
      %s264 = ssub.s32 256, 256
      %265 = vsyncadd [#allocation4], %s264
      %s267 = sshll.u32 [#allocation8], 4
      %s268 = int_to_ptr.vmem [resolvable:$true] %s267
      %270 = dma.vmem_to_hbm [thread:$0]  %s268, 256, %s3, [#allocation4]
    $region29: #{tpu_custom_call.1} parent=1 // pred_fallthru
      _
    // Predicated region
    $region30: #{tpu_custom_call.1} parent=1 // pred_check
      _
    $region31: #{tpu_custom_call.1} parent=1 // pred_check_branch
      %272 = sbr.rel (0) target = $region33
    $region32: #{tpu_custom_call.1} parent=1 // pred_region
      %s274 = ssub.s32 128, 128
      %275 = vsyncadd [#allocation10], %s274
      %s277 = sshll.u32 [#allocation9], 4
      %s278 = int_to_ptr.vmem [resolvable:$true] %s277
      %280 = dma.vmem_to_hbm [thread:$0]  %s278, 128, %s4, [#allocation10]
    $region33: #{tpu_custom_call.1} parent=1 // pred_fallthru
      _
    // Predicated region
    $region34: #{tpu_custom_call.1} parent=1 // pred_check
      _
    $region35: #{tpu_custom_call.1} parent=1 // pred_check_branch
      %282 = sbr.rel (0) target = $region37
    $region36: #{tpu_custom_call.1} parent=1 // pred_region
      %283 = dma.done [#allocation4], 256
    $region37: #{tpu_custom_call.1} parent=1 // pred_fallthru
      _
    // Predicated region
    $region38: #{tpu_custom_call.1} parent=1 // pred_check
      _
    $region39: #{tpu_custom_call.1} parent=1 // pred_check_branch
      %285 = sbr.rel (0) target = $region41
    $region40: #{tpu_custom_call.1} parent=1 // pred_region
      %286 = dma.done [#allocation10], 128
    $region41: #{tpu_custom_call.1} parent=1 // pred_fallthru
      _
    %287 = vsyncpa [#allocation3], 1
    %288 = vsyncpa [#allocation6], 1
    %289 = vsyncpa [#allocation4], 1
    %290 = vsyncpa [#allocation10], 1

</llo_original>
